<compile_context>
chip_gen: v7x
topology: tpu7x:2x2x1
jax: 0.10.0
libtpu: 0.0.40
codegen_flags: <defaults>
</compile_context>

<pallas_src>
import functools

import numpy as np
import jax
import jax.numpy as jnp
from jax.experimental import pallas as pl
from jax.experimental.pallas import tpu as pltpu


# ---------------------------------------------------------------------------
# Small helpers
# ---------------------------------------------------------------------------
def _round_up(x, m):
    return ((x + m - 1) // m) * m


def _cdiv(a, b):
    return -(-a // b)


def _vmem_capacity_bytes():
    """Physical VMEM of the current chip (fallback: 64 MiB = v7x, smallest)."""
    try:
        return int(pltpu.get_tpu_info().vmem_capacity_bytes)
    except Exception:
        return 64 * 1024 * 1024


def _footprint_bytes(tm, tn, tk, in_bytes, out_bytes, has_bias):
    """Live VMEM estimate: double-buffered in/out blocks + f32 accumulator."""
    x_blk = tm * tk * in_bytes
    w_blk = tk * tn * in_bytes
    o_blk = tm * tn * out_bytes
    b_blk = tn * 4 if has_bias else 0
    acc = tm * tn * 4
    return 2 * (x_blk + w_blk + o_blk + b_blk) + acc


def _select_tiles(M, K, N, in_bytes, out_bytes, has_bias, budget,
                  tm=None, tn=None, tk=None):
    """Pick (tm, tn, tk) fitting `budget` bytes of VMEM; return padded dims."""
    M_al = _round_up(max(int(M), 1), 8)       # f32 sublane quantum
    K_al = _round_up(max(int(K), 1), 128)     # lane quantum
    N_al = _round_up(max(int(N), 1), 128)

    tm = min(M_al, 512) if tm is None else min(_round_up(int(tm), 8), M_al)
    tn = min(N_al, 512) if tn is None else min(_round_up(int(tn), 128), N_al)
    tk = min(K_al, 2048) if tk is None else min(_round_up(int(tk), 128), K_al)

    def fits():
        return _footprint_bytes(tm, tn, tk, in_bytes, out_bytes, has_bias) <= budget

    # Shrink K tile first (keeps the MXU output tile big), then N, then M.
    while not fits() and tk > 512:
        tk = max(512, _round_up(tk // 2, 128))
    while not fits() and tn > 128:
        tn = max(128, _round_up(tn // 2, 128))
    while not fits() and tm > 128:
        tm = max(128, _round_up(tm // 2, 8))
    while not fits() and tk > 128:
        tk = max(128, _round_up(tk // 2, 128))
    while not fits() and tm > 8:
        tm = max(8, _round_up(tm // 2, 8))

    # Balance tiles so zero-padding waste is minimal (never grows a tile).
    m_tiles = _cdiv(M_al, tm)
    tm = _round_up(_cdiv(M_al, m_tiles), 8)
    n_tiles = _cdiv(N_al, tn)
    tn = _round_up(_cdiv(N_al, n_tiles), 128)
    k_tiles = _cdiv(K_al, tk)
    tk = _round_up(_cdiv(K_al, k_tiles), 128)

    fp = _footprint_bytes(tm, tn, tk, in_bytes, out_bytes, has_bias)
    return tm, tn, tk, tm * m_tiles, tk * k_tiles, tn * n_tiles, fp


# ---------------------------------------------------------------------------
# Kernels
# ---------------------------------------------------------------------------
def _fullk_kernel(*refs, has_bias, compute_dtype):
    """Whole contraction in one grid step (no accumulator scratch)."""
    if has_bias:
        x_ref, w_ref, b_ref, o_ref = refs
    else:
        x_ref, w_ref, o_ref = refs
        b_ref = None
    x = x_ref[...]
    w = w_ref[...]
    if compute_dtype is not None:
        x = x.astype(compute_dtype)
        w = w.astype(compute_dtype)
    acc = jnp.dot(x, w, preferred_element_type=jnp.float32)
    if b_ref is not None:
        acc = acc + b_ref[...]
    o_ref[...] = acc.astype(o_ref.dtype)


def _ksplit_kernel(*refs, has_bias, compute_dtype):
    """K-tiled contraction: f32 VMEM accumulator, init/finalize via pl.when."""
    if has_bias:
        x_ref, w_ref, b_ref, o_ref, acc_ref = refs
    else:
        x_ref, w_ref, o_ref, acc_ref = refs
        b_ref = None
    k = pl.program_id(2)

    @pl.when(k == 0)
    def _init():
        acc_ref[...] = jnp.zeros_like(acc_ref)

    x = x_ref[...]
    w = w_ref[...]
    if compute_dtype is not None:
        x = x.astype(compute_dtype)
        w = w.astype(compute_dtype)
    acc_ref[...] += jnp.dot(x, w, preferred_element_type=jnp.float32)

    @pl.when(k == pl.num_programs(2) - 1)
    def _finalize():
        acc = acc_ref[...]
        if b_ref is not None:
            acc = acc + b_ref[...]
        o_ref[...] = acc.astype(o_ref.dtype)


# ---------------------------------------------------------------------------
# Wrapper: mirrors FusedLinear.forward
#   inputs : list of arrays with identical leading dims, last dims d_i
#   weight : (sum(d_i), total_out)  -- PyTorch nn.Linear weight, transposed
#   bias   : (total_out,) or None
# ---------------------------------------------------------------------------
def fused_linear(inputs, weight, bias=None, *, out_feature_list=None,
                 in_feature_list=None, compute_dtype=None,
                 tm=None, tn=None, tk=None):
    inputs = list(inputs)
    # Module's ValueError checks live here (host-side Python, not in-kernel).
    if in_feature_list is not None:
        if (len(inputs) != len(in_feature_list)
                or any(int(v.shape[-1]) != int(d)
                       for v, d in zip(inputs, in_feature_list))):
            raise ValueError(
                f'expected inputs of size {list(in_feature_list)}, '
                f'got {[int(v.shape[-1]) for v in inputs]}')

    in_dims = [int(v.shape[-1]) for v in inputs]
    total_in = sum(in_dims)
    if int(weight.shape[0]) != total_in:
        raise ValueError(
            f'expected inputs summing to {int(weight.shape[0])} features, '
            f'got {in_dims} (total {total_in})')
    total_out = int(weight.shape[1])
    if out_feature_list is not None and sum(out_feature_list) != total_out:
        raise ValueError('out_feature_list must sum to weight.shape[1]')

    lead = tuple(inputs[0].shape[:-1])
    for v in inputs[1:]:
        if tuple(v.shape[:-1]) != lead:
            raise ValueError('all inputs must share identical leading dims')

    out_dtype = inputs[0].dtype
    M = int(np.prod(lead, dtype=np.int64)) if len(lead) else 1
    K, N = total_in, total_out

    # Fuse torch.cat in the wrapper: one (M, K) operand means the kernel runs
    # ONE long-K MXU contraction against the UNSLICED weight (no per-input
    # weight row-slices, no tiny K=d_i dots, no VALU add chain).
    xs2d = [v.reshape(M, d) for v, d in zip(inputs, in_dims)]
    x2d = xs2d[0] if len(xs2d) == 1 else jnp.concatenate(xs2d, axis=-1)

    has_bias = bias is not None
    in_bytes = int(np.dtype(x2d.dtype).itemsize)
    out_bytes = int(np.dtype(out_dtype).itemsize)

    cap = _vmem_capacity_bytes()
    budget = min(cap // 2, 48 << 20)          # generation-aware live-VMEM target
    tm, tn, tk, M_pad, K_pad, N_pad, footprint = _select_tiles(
        M, K, N, in_bytes, out_bytes, has_bias, budget, tm=tm, tn=tn, tk=tk)
    vmem_limit = int(min(int(cap * 0.9), max(footprint + (4 << 20), 32 << 20)))

    # Zero-pad to tile multiples: K padding keeps the tiled accumulation exact,
    # N padding keeps every output store lane-dense (128-wide).  No-op when
    # already aligned.
    if (M_pad, K_pad) != (M, K):
        x2d = jnp.pad(x2d, ((0, M_pad - M), (0, K_pad - K)))
    w2d = weight
    if (K_pad, N_pad) != (K, N):
        w2d = jnp.pad(weight, ((0, K_pad - K), (0, N_pad - N)))
    b2d = None
    if has_bias:
        b2d = jnp.reshape(bias, (1, N))
        if N_pad != N:
            b2d = jnp.pad(b2d, ((0, 0), (0, N_pad - N)))

    m_tiles, n_tiles, k_tiles = M_pad // tm, N_pad // tn, K_pad // tk

    cost = pl.CostEstimate(
        flops=2 * M * K * N,
        transcendentals=0,
        bytes_accessed=int(M_pad * K_pad * in_bytes + K_pad * N_pad * in_bytes
                           + M_pad * N_pad * out_bytes
                           + (N_pad * 4 if has_bias else 0)),
    )

    if k_tiles == 1:
        # Fast path: whole contraction in one grid step (no accumulator).
        # Choose the loop order so the LARGER operand is DMA'd from HBM once:
        #   weight-heavy   -> m innermost (weight block index constant over m)
        #   activation-heavy -> n innermost (x block index constant over n)
        if K_pad * N_pad >= M_pad * K_pad:
            grid = (n_tiles, m_tiles)
            x_map = lambda n, m: (m, 0)
            w_map = lambda n, m: (0, n)
            b_map = lambda n, m: (0, n)
            o_map = lambda n, m: (m, n)
        else:
            grid = (m_tiles, n_tiles)
            x_map = lambda m, n: (m, 0)
            w_map = lambda m, n: (0, n)
            b_map = lambda m, n: (0, n)
            o_map = lambda m, n: (m, n)

        in_specs = [pl.BlockSpec((tm, K_pad), x_map),
                    pl.BlockSpec((K_pad, tn), w_map)]
        args = [x2d, w2d]
        if has_bias:
            in_specs.append(pl.BlockSpec((1, tn), b_map))
            args.append(b2d)

        out2d = pl.pallas_call(
            functools.partial(_fullk_kernel, has_bias=has_bias,
                              compute_dtype=compute_dtype),
            out_shape=jax.ShapeDtypeStruct((M_pad, N_pad), out_dtype),
            grid_spec=pltpu.PrefetchScalarGridSpec(
                num_scalar_prefetch=0,
                grid=grid,
                in_specs=in_specs,
                out_specs=pl.BlockSpec((tm, tn), o_map)),
            compiler_params=pltpu.CompilerParams(
                dimension_semantics=("parallel", "parallel"),
                vmem_limit_bytes=vmem_limit),
            cost_estimate=cost,
        )(*args)
    else:
        # K-tiled path: grid (M, N, K) with K ("arbitrary") last, f32
        # accumulator in VMEM scratch.  Footprint independent of total_in.
        # TODO(synk): if the weight DMA is still exposed on v5e/v6e, sweep
        # pipeline_mode=pl.Buffered(3) on the weight BlockSpec.
        in_specs = [pl.BlockSpec((tm, tk), lambda m, n, k: (m, k)),
                    pl.BlockSpec((tk, tn), lambda m, n, k: (k, n))]
        args = [x2d, w2d]
        if has_bias:
            in_specs.append(pl.BlockSpec((1, tn), lambda m, n, k: (0, n)))
            args.append(b2d)

        out2d = pl.pallas_call(
            functools.partial(_ksplit_kernel, has_bias=has_bias,
                              compute_dtype=compute_dtype),
            out_shape=jax.ShapeDtypeStruct((M_pad, N_pad), out_dtype),
            grid_spec=pltpu.PrefetchScalarGridSpec(
                num_scalar_prefetch=0,
                grid=(m_tiles, n_tiles, k_tiles),
                in_specs=in_specs,
                out_specs=pl.BlockSpec((tm, tn), lambda m, n, k: (m, n)),
                scratch_shapes=[pltpu.VMEM((tm, tn), jnp.float32)]),
            compiler_params=pltpu.CompilerParams(
                dimension_semantics=("parallel", "parallel", "arbitrary"),
                vmem_limit_bytes=vmem_limit),
            cost_estimate=cost,
        )(*args)

    # Strip padding and restore leading dims.
    out = out2d
    if (M_pad, N_pad) != (M, N):
        out = out[:M, :N]
    out = out.reshape(*lead, N)

    if out_feature_list is None or len(out_feature_list) == 1:
        return out
    # torch.split equivalent.  NOTE: under jit these XLA slices may copy.
    # TODO(synk): emit the split outputs directly from pallas_call (one
    # out_spec per 128-aligned piece) if the extra HBM pass ever matters.
    outs, off = [], 0
    for d in out_feature_list:
        outs.append(out[..., off:off + d])
        off += d
    return tuple(outs)


# ---------------------------------------------------------------------------
# Host-side reference (float64 numpy) mirroring FusedLinear.forward
# ---------------------------------------------------------------------------
def ref_fused_linear(inputs, weight, bias, out_feature_list):
    x = np.concatenate([np.asarray(v, np.float64) for v in inputs], axis=-1)
    y = x @ np.asarray(weight, np.float64)
    if bias is not None:
        y = y + np.asarray(bias, np.float64)
    if len(out_feature_list) == 1:
        return y
    outs, off = [], 0
    for d in out_feature_list:
        outs.append(y[..., off:off + d])
        off += d
    return tuple(outs)


# ---------------------------------------------------------------------------
if __name__ == "__main__":
    key = jax.random.PRNGKey(0)
    TOL = dict(rtol=1e-3, atol=1e-3)   # margin for f32 MXU vs float64 reference

    # ---- Test 1: two fused inputs, two split outputs, unaligned dims
    #              (exercises zero-padding + single-K fast path) -------------
    B, S = 2, 8
    in_feats = [16, 16]
    out_feats = [24, 8]
    ti, to = sum(in_feats), sum(out_feats)
    k1, k2, k3, k4 = jax.random.split(key, 4)
    x1 = jax.random.normal(k1, (B, S, in_feats[0]), jnp.float32)
    x2 = jax.random.normal(k2, (B, S, in_feats[1]), jnp.float32)
    weight = jax.random.normal(k3, (ti, to), jnp.float32) / np.sqrt(ti)
    bias = jax.random.normal(k4, (to,), jnp.float32) * 0.02

    y1, y2 = fused_linear([x1, x2], weight, bias,
                          out_feature_list=out_feats, in_feature_list=in_feats)
    jax.block_until_ready(y1)
    jax.block_until_ready(y2)
    r1, r2 = ref_fused_linear([x1, x2], weight, bias, out_feats)
    np.testing.assert_allclose(np.asarray(y1), r1, **TOL)
    np.testing.assert_allclose(np.asarray(y2), r2, **TOL)

    # ---- Test 2: force the K-tiled accumulator path (grid (2, 2, 2)) -------
    in_feats2 = [128, 128]
    out_feats2 = [128, 128]
    ti2, to2 = sum(in_feats2), sum(out_feats2)
    k5, k6, k7, k8 = jax.random.split(k4, 4)
    a1 = jax.random.normal(k5, (B, S, in_feats2[0]), jnp.float32)
    a2 = jax.random.normal(k6, (B, S, in_feats2[1]), jnp.float32)
    w2 = jax.random.normal(k7, (ti2, to2), jnp.float32) / np.sqrt(ti2)
    b2 = jax.random.normal(k8, (to2,), jnp.float32) * 0.02

    z1, z2 = fused_linear([a1, a2], w2, b2, out_feature_list=out_feats2,
                          tm=8, tn=128, tk=128)
    jax.block_until_ready(z1)
    jax.block_until_ready(z2)
    s1, s2 = ref_fused_linear([a1, a2], w2, b2, out_feats2)
    np.testing.assert_allclose(np.asarray(z1), s1, **TOL)
    np.testing.assert_allclose(np.asarray(z2), s2, **TOL)

    # ---- Test 3: single input / single output / no bias --------------------
    w_single = weight[:in_feats[0], :]
    y_single = fused_linear([x1], w_single, None, out_feature_list=[to])
    jax.block_until_ready(y_single)
    r_single = ref_fused_linear([x1], w_single, None, [to])
    np.testing.assert_allclose(np.asarray(y_single), r_single, **TOL)

    print("KERNEL_OK")
</pallas_src>

<mosaic_0001>
module attributes {stable_mosaic.version = 11 : i64} {
  func.func @_fullk_kernel(%arg0: i32, %arg1: i32, %arg2: memref<16x128xf32, #tpu.memory_space<vmem>>, %arg3: memref<128x128xf32, #tpu.memory_space<vmem>>, %arg4: memref<1x128xf32, #tpu.memory_space<vmem>>, %arg5: memref<16x128xf32, #tpu.memory_space<vmem>>) attributes {dimension_semantics = [#tpu.dimension_semantics<parallel>, #tpu.dimension_semantics<parallel>], iteration_bounds = array<i64: 1, 1>, scalar_prefetch = 0 : i64, scratch_operands = 0 : i64, tpu.core_type = #tpu.core_type<tc>, window_params = [{transform_indices = @transform_0, window_bounds = array<i64: 16, 128>}, {transform_indices = @transform_1, window_bounds = array<i64: 128, 128>}, {transform_indices = @transform_2, window_bounds = array<i64: 1, 128>}, {transform_indices = @transform_3, window_bounds = array<i64: 16, 128>}]} {
    %c0 = arith.constant 0 : index
    %c0_0 = arith.constant 0 : index
    %0 = vector.load %arg2[%c0, %c0_0] : memref<16x128xf32, #tpu.memory_space<vmem>>, vector<16x128xf32>
    %c0_1 = arith.constant 0 : index
    %c0_2 = arith.constant 0 : index
    %1 = vector.load %arg3[%c0_1, %c0_2] : memref<128x128xf32, #tpu.memory_space<vmem>>, vector<128x128xf32>
    %cst = arith.constant dense<0.000000e+00> : vector<16x128xf32>
    %2 = tpu.matmul %0, %1, %cst {dimension_numbers = #tpu.dot_dimension_numbers<[1], [0], [0], [1], [0, 0, 1, 1], [], []>} : vector<16x128xf32>, vector<128x128xf32>, vector<16x128xf32> -> vector<16x128xf32>
    %c0_3 = arith.constant 0 : index
    %c0_4 = arith.constant 0 : index
    %3 = vector.load %arg4[%c0_3, %c0_4] : memref<1x128xf32, #tpu.memory_space<vmem>>, vector<1x128xf32>
    %4 = vector.broadcast %3 : vector<1x128xf32> to vector<16x128xf32>
    %5 = arith.addf %2, %4 : vector<16x128xf32>
    %c0_5 = arith.constant 0 : index
    %c0_6 = arith.constant 0 : index
    %6 = vector.load %arg5[%c0_5, %c0_6] : memref<16x128xf32, #tpu.memory_space<vmem>>, vector<16x128xf32>
    tpu.vector_store %arg5[%c0_5, %c0_6], %5 {strides = array<i32>} : memref<16x128xf32, #tpu.memory_space<vmem>>, vector<16x128xf32>,
    return
  }
  func.func @transform_0(%arg0: i32, %arg1: i32) -> (i32, i32) {
    %c0_i32 = arith.constant 0 : i32
    %c0_i32_0 = arith.constant 0 : i32
    return %arg1, %c0_i32 : i32, i32
  }
  func.func @transform_1(%arg0: i32, %arg1: i32) -> (i32, i32) {
    %c0_i32 = arith.constant 0 : i32
    %c0_i32_0 = arith.constant 0 : i32
    return %c0_i32, %arg0 : i32, i32
  }
  func.func @transform_2(%arg0: i32, %arg1: i32) -> (i32, i32) {
    %c0_i32 = arith.constant 0 : i32
    %c0_i32_0 = arith.constant 0 : i32
    return %c0_i32, %arg0 : i32, i32
  }
  func.func @transform_3(%arg0: i32, %arg1: i32) -> (i32, i32) {
    %c0_i32 = arith.constant 0 : i32
    return %arg1, %arg0 : i32, i32
  }
}

</mosaic_0001>

<llo_original>
// kernel: tpu_custom_call.1
$region0: #{tpu_custom_call.1}
  #allocation0 [shape = 'u32[]', space=smem, size = 0x4, offset = 0x4, fixed_abs, tag = 'smem constant byte address 0x4 - core index']
  #allocation1 [shape = 'u32[144,128]{1,0:T(1,128)}', space=vmem, size = 0x12000, scoped, tag = 'internal scratch']
  %s0 = inlined_call_operand.hbm [shape: f32[16,128], index: 0, kind: input, shape index: {}]
  %s1 = inlined_call_operand.hbm [shape: f32[128,128], index: 1, kind: input, shape index: {}]
  %s2 = inlined_call_operand.vmem [shape: f32[1,128], index: 2, kind: input, shape index: {}]
  %s3 = inlined_call_operand.hbm [shape: f32[16,128], index: 3, kind: output, shape index: {}]
  %s4 = sld [smem:[#allocation0]]
  $region30: #{tpu_custom_call.1} parent=0
    _
  %s6 = ssub.s32 1, %s4
  %s7 = scalar_select 0, %s6, %s4
  $region1: #{tpu_custom_call.1} parent=0
    #allocation2 [shape = 'u8[8192]{0}', space=vmem, size = 0x2000, scoped, tag = 'input window, operand 0, single buffered']
    #allocation3 [shape = 's32[1]{0}', space=sflag, size = 0x4, scoped, tag = 'scoped memory for tpu_custom_call.1']
    #allocation4 [shape = 's32[1]{0}', space=sflag, size = 0x4, scoped, tag = 'scoped memory for tpu_custom_call.1']
    #allocation5 [shape = 'u8[65536]{0}', space=vmem, size = 0x10000, scoped, tag = 'input window, operand 1, single buffered']
    #allocation6 [shape = 's32[1]{0}', space=sflag, size = 0x4, scoped, tag = 'scoped memory for tpu_custom_call.1']
    #allocation7 [shape = 'u8[8192]{0}', space=vmem, size = 0x2000, scoped, tag = 'output window, operand 0, single buffered']
    %8 = vsyncpa [#allocation3], 0
    %9 = vsyncpa [#allocation6], 0
    %10 = vsyncpa [#allocation4], 0
    // Predicated region
    $region2: #{tpu_custom_call.1} parent=1 // pred_check
      _
    $region3: #{tpu_custom_call.1} parent=1 // pred_check_branch
      %12 = sbr.rel (0) target = $region5
    $region4: #{tpu_custom_call.1} parent=1 // pred_region
      %s14 = ssub.s32 256, 256
      %15 = vsyncadd [#allocation3], %s14
      %s16 = sshll.u32 [#allocation2], 4
      %s17 = int_to_ptr.vmem [resolvable:$true] %s16
      %22 = dma.hbm_to_vmem [thread:$0]  %s0, 256, %s17, [#allocation3], 128, 128, 8
    $region5: #{tpu_custom_call.1} parent=1 // pred_fallthru
      _
    // Predicated region
    $region6: #{tpu_custom_call.1} parent=1 // pred_check
      _
    $region7: #{tpu_custom_call.1} parent=1 // pred_check_branch
      %24 = sbr.rel (0) target = $region9
    $region8: #{tpu_custom_call.1} parent=1 // pred_region
      %s26 = ssub.s32 2048, 2048
      %27 = vsyncadd [#allocation6], %s26
      %s28 = sshll.u32 [#allocation5], 4
      %s29 = int_to_ptr.vmem [resolvable:$true] %s28
      %34 = dma.hbm_to_vmem [thread:$0]  %s1, 2048, %s29, [#allocation6], 128, 128, 8
    $region9: #{tpu_custom_call.1} parent=1 // pred_fallthru
      _
    // Predicated region
    $region10: #{tpu_custom_call.1} parent=1 // pred_check
      _
    $region11: #{tpu_custom_call.1} parent=1 // pred_check_branch
      %36 = sbr.rel (0) target = $region13
    $region12: #{tpu_custom_call.1} parent=1 // pred_region
      _
    $region13: #{tpu_custom_call.1} parent=1 // pred_fallthru
      _
    // Predicated region
    $region14: #{tpu_custom_call.1} parent=1 // pred_check
      _
    $region15: #{tpu_custom_call.1} parent=1 // pred_check_branch
      %38 = sbr.rel (0) target = $region17
    $region16: #{tpu_custom_call.1} parent=1 // pred_region
      %39 = dma.done [#allocation3], 256
    $region17: #{tpu_custom_call.1} parent=1 // pred_fallthru
      _
    // Predicated region
    $region18: #{tpu_custom_call.1} parent=1 // pred_check
      _
    $region19: #{tpu_custom_call.1} parent=1 // pred_check_branch
      %41 = sbr.rel (0) target = $region21
    $region20: #{tpu_custom_call.1} parent=1 // pred_region
      %42 = dma.done [#allocation6], 2048
    $region21: #{tpu_custom_call.1} parent=1 // pred_fallthru
      _
    %v43 = vld [vmem:[#allocation2] sm:$0xff]
    %v44 = vld [vmem:[#allocation2 + $0x8] sm:$0xff]
    %v45 = vld [vmem:[#allocation5] sm:$0xff]
    %v46 = vld [vmem:[#allocation5 + $0x8] sm:$0xff]
    %v47 = vld [vmem:[#allocation5 + $0x10] sm:$0xff]
    %v48 = vld [vmem:[#allocation5 + $0x18] sm:$0xff]
    %v49 = vld [vmem:[#allocation5 + $0x20] sm:$0xff]
    %v50 = vld [vmem:[#allocation5 + $0x28] sm:$0xff]
    %v51 = vld [vmem:[#allocation5 + $0x30] sm:$0xff]
    %v52 = vld [vmem:[#allocation5 + $0x38] sm:$0xff]
    %v53 = vld [vmem:[#allocation5 + $0x40] sm:$0xff]
    %v54 = vld [vmem:[#allocation5 + $0x48] sm:$0xff]
    %v55 = vld [vmem:[#allocation5 + $0x50] sm:$0xff]
    %v56 = vld [vmem:[#allocation5 + $0x58] sm:$0xff]
    %v57 = vld [vmem:[#allocation5 + $0x60] sm:$0xff]
    %v58 = vld [vmem:[#allocation5 + $0x68] sm:$0xff]
    %v59 = vld [vmem:[#allocation5 + $0x70] sm:$0xff]
    %v60 = vld [vmem:[#allocation5 + $0x78] sm:$0xff]
    %v61 = vld [vmem:[%s2] sm:$0x1]
    %v63 = vlaneseq
    %v64 = vshrl.u32 %v63, 7
    %v65 = vsub.s32 0, %v64
    %v66 = vrot.slane %v61, %v65
    %68 = vmatprep.subr.mxu0 0.0
    %69 = vmatpush1.msra.mxu0 %v45
    %70 = vmatprep.subr.mxu0 0.0
    %71 = vmatpush1.msra.mxu0 %v46
    %72 = vmatprep.subr.mxu0 0.0
    %73 = vmatpush1.msra.mxu0 %v47
    %74 = vmatprep.subr.mxu0 0.0
    %75 = vmatpush1.msra.mxu0 %v48
    %76 = vmatprep.subr.mxu0 0.0
    %77 = vmatpush1.msra.mxu0 %v49
    %78 = vmatprep.subr.mxu0 0.0
    %79 = vmatpush1.msra.mxu0 %v50
    %80 = vmatprep.subr.mxu0 0.0
    %81 = vmatpush1.msra.mxu0 %v51
    %82 = vmatprep.subr.mxu0 0.0
    %83 = vmatpush1.msra.mxu0 %v52
    %84 = vmatprep.subr.mxu0 0.0
    %85 = vmatpush1.msra.mxu0 %v53
    %86 = vmatprep.subr.mxu0 0.0
    %87 = vmatpush1.msra.mxu0 %v54
    %88 = vmatprep.subr.mxu0 0.0
    %89 = vmatpush1.msra.mxu0 %v55
    %90 = vmatprep.subr.mxu0 0.0
    %91 = vmatpush1.msra.mxu0 %v56
    %92 = vmatprep.subr.mxu0 0.0
    %93 = vmatpush1.msra.mxu0 %v57
    %94 = vmatprep.subr.mxu0 0.0
    %95 = vmatpush1.msra.mxu0 %v58
    %96 = vmatprep.subr.mxu0 0.0
    %97 = vmatpush1.msra.mxu0 %v59
    %98 = vmatprep.subr.mxu0 0.0
    %99 = vmatpush1.msra.mxu0 %v60
    %100 = vmatprep.subr.mxu0 0.0
    %101 = vmatpush1.msra.mxu0 0.0
    %102 = vmatprep.subr.mxu0 0.0
    %103 = vmatpush1.msra.mxu0 0.0
    %104 = vmatprep.subr.mxu0 0.0
    %105 = vmatpush1.msra.mxu0 0.0
    %106 = vmatprep.subr.mxu0 0.0
    %107 = vmatpush1.msra.mxu0 0.0
    %108 = vmatprep.subr.mxu0 0.0
    %109 = vmatpush1.msra.mxu0 0.0
    %110 = vmatprep.subr.mxu0 0.0
    %111 = vmatpush1.msra.mxu0 0.0
    %112 = vmatprep.subr.mxu0 0.0
    %113 = vmatpush1.msra.mxu0 0.0
    %114 = vmatprep.subr.mxu0 0.0
    %115 = vmatpush1.msra.mxu0 0.0
    %116 = vmatprep.subr.mxu0 0.0
    %117 = vmatpush1.msra.mxu0 0.0
    %118 = vmatprep.subr.mxu0 0.0
    %119 = vmatpush1.msra.mxu0 0.0
    %120 = vmatprep.subr.mxu0 0.0
    %121 = vmatpush1.msra.mxu0 0.0
    %122 = vmatprep.subr.mxu0 0.0
    %123 = vmatpush1.msra.mxu0 0.0
    %124 = vmatprep.subr.mxu0 0.0
    %125 = vmatpush1.msra.mxu0 0.0
    %126 = vmatprep.subr.mxu0 0.0
    %127 = vmatpush1.msra.mxu0 0.0
    %128 = vmatprep.subr.mxu0 0.0
    %129 = vmatpush1.msra.mxu0 0.0
    %130 = vmatprep.subr.mxu0 0.0
    %131 = vmatpush1.msra.mxu0 0.0
    %132 = vmatprep.mubr.f32.mxu0 0.0
    %133 = vmatmul.mubr.f32.gmra.mrb[0].mxu0 %v43
    %v134 = vpop.f32.mrb[0].mxu0
    %v135 = vadd.f32 %v66, %v134
    %v136 = vpop.f32.mrb[0].mxu0
    %137 = vmatprep.mubr.f32.mxu0 0.0
    %138 = vmatmul.mubr.f32.gmra.mrb[0].mxu0 %v44
    %v139 = vpop.f32.mrb[0].mxu0
    %v140 = vadd.f32 %v66, %v139
    %v141 = vpop.f32.mrb[0].mxu0
    %142 = vdwg.mxu0
    %143 = vst [vmem:[#allocation7] sm:$0xff] %v135
    %144 = vst [vmem:[#allocation7 + $0x8] sm:$0xff] %v140
    // Predicated region
    $region22: #{tpu_custom_call.1} parent=1 // pred_check
      _
    $region23: #{tpu_custom_call.1} parent=1 // pred_check_branch
      %146 = sbr.rel (0) target = $region25
    $region24: #{tpu_custom_call.1} parent=1 // pred_region
      %s148 = ssub.s32 256, 256
      %149 = vsyncadd [#allocation4], %s148
      %s150 = sshll.u32 [#allocation7], 4
      %s151 = int_to_ptr.vmem [resolvable:$true] %s150
      %156 = dma.vmem_to_hbm [thread:$0]  %s151, 256, %s3, [#allocation4], 128, 128, 8
    $region25: #{tpu_custom_call.1} parent=1 // pred_fallthru
      _
    // Predicated region
    $region26: #{tpu_custom_call.1} parent=1 // pred_check
      _
    $region27: #{tpu_custom_call.1} parent=1 // pred_check_branch
      %158 = sbr.rel (0) target = $region29
    $region28: #{tpu_custom_call.1} parent=1 // pred_region
      %159 = dma.done [#allocation4], 256
    $region29: #{tpu_custom_call.1} parent=1 // pred_fallthru
      _
    %160 = vsyncpa [#allocation3], 1
    %161 = vsyncpa [#allocation6], 1
    %162 = vsyncpa [#allocation4], 1

</llo_original>
